<compile_context>
chip_gen: v6e
topology: v6e:2x2x1
jax: 0.10.0
libtpu: 0.0.40
codegen_flags: <defaults>
</compile_context>

<pallas_src>
import math

import jax
import jax.numpy as jnp
from jax.experimental import pallas as pl
from jax.experimental.pallas import tpu as pltpu


# ----------------------------------------------------------------------------
# Parameter construction (matches the PyTorch module's __init__ / initialize()).
# ----------------------------------------------------------------------------
def _make_sinusoidal_table(T: int, d_model: int) -> jnp.ndarray:
    assert d_model % 2 == 0
    emb = jnp.arange(0, d_model, 2, dtype=jnp.float32) / d_model * math.log(10000.0)
    emb = jnp.exp(-emb)                                      # [d_model // 2]
    pos = jnp.arange(T, dtype=jnp.float32)                   # [T]
    emb = pos[:, None] * emb[None, :]                        # [T, d_model // 2]
    emb = jnp.stack([jnp.sin(emb), jnp.cos(emb)], axis=-1)   # [T, d_model//2, 2]
    return emb.reshape(T, d_model)                           # [T, d_model]


def _xavier_uniform(key, fan_in: int, fan_out: int) -> jnp.ndarray:
    bound = math.sqrt(6.0 / (fan_in + fan_out))
    # Returned already transposed to [in, out] (PyTorch stores [out, in]).
    return jax.random.uniform(
        key, (fan_in, fan_out), dtype=jnp.float32, minval=-bound, maxval=bound
    )


def _round_up(x: int, m: int) -> int:
    return ((x + m - 1) // m) * m


# ----------------------------------------------------------------------------
# Fused kernel: one-hot MXU gather(t) -> Linear -> Swish -> Linear
# ----------------------------------------------------------------------------
def _time_embedding_kernel(t_ref, table_ref, w1_ref, b1_ref, w2_ref, b2_ref, o_ref):
    # t_ref    : VMEM i32 [block_b, 1]
    # table_ref: VMEM f32 [T_pad, d_model_pad]      (resident, constant index_map)
    # w1_ref   : VMEM f32 [d_model_pad, dim_pad]
    # b1_ref   : VMEM f32 [1, dim_pad]
    # w2_ref   : VMEM f32 [dim_pad, dim_pad]
    # b2_ref   : VMEM f32 [1, dim_pad]
    # o_ref    : VMEM f32 [block_b, dim_pad]
    block_b = o_ref.shape[0]
    T_pad = table_ref.shape[0]

    # ---- one-hot MXU gather: x[b, :] = table[t[b], :] -----------------------
    t = t_ref[...]                                                   # [block_b, 1]
    col = jax.lax.broadcasted_iota(jnp.int32, (block_b, T_pad), 1)   # [block_b, T_pad]
    onehot = (col == t).astype(jnp.float32)                          # exact 0/1 select
    x = jnp.dot(onehot, table_ref[...], preferred_element_type=jnp.float32)

    # ---- Linear -> Swish -> Linear ------------------------------------------
    h = jnp.dot(x, w1_ref[...], preferred_element_type=jnp.float32) + b1_ref[...]
    h = h * jax.nn.sigmoid(h)                                        # Swish (EUP)
    o = jnp.dot(h, w2_ref[...], preferred_element_type=jnp.float32) + b2_ref[...]
    o_ref[...] = o.astype(o_ref.dtype)


def time_embedding_forward(t, emb_table, w1, b1, w2, b2):
    """t: int32 [B]. Returns float32 [B, dim] == TimeEmbedding.forward(t)."""
    T, d_model = emb_table.shape
    dim = w1.shape[1]
    B = t.shape[0]

    emb_table = emb_table.astype(jnp.float32)
    w1 = w1.astype(jnp.float32)
    w2 = w2.astype(jnp.float32)
    b1 = jnp.reshape(b1, (1, dim)).astype(jnp.float32)
    b2 = jnp.reshape(b2, (1, dim)).astype(jnp.float32)

    # --- lane-dense padding: output dims AND the first matmul's K (d_model) ---
    dim_pad = _round_up(dim, 128)
    d_model_pad = _round_up(d_model, 128)
    T_pad = _round_up(T, 8)

    if d_model_pad != d_model:
        emb_table = jnp.pad(emb_table, ((0, 0), (0, d_model_pad - d_model)))
        w1 = jnp.pad(w1, ((0, d_model_pad - d_model), (0, 0)))
    if T_pad != T:
        emb_table = jnp.pad(emb_table, ((0, T_pad - T), (0, 0)))
    if dim_pad != dim:
        pad_n = dim_pad - dim
        w1 = jnp.pad(w1, ((0, 0), (0, pad_n)))
        b1 = jnp.pad(b1, ((0, 0), (0, pad_n)))
        w2 = jnp.pad(w2, ((0, pad_n), (0, pad_n)))
        b2 = jnp.pad(b2, ((0, 0), (0, pad_n)))

    # --- batch tiling: single grid step for small batches; cap block_b by the
    #     live f32 activation size at wide dims so `h` stays in vregs ----------
    B_pad8 = _round_up(max(B, 1), 8)
    if dim_pad >= 2048:
        max_block = 64
    elif dim_pad >= 1024:
        max_block = 128
    else:
        max_block = 256
    block_b = B_pad8 if B_pad8 <= max_block else max_block
    B_pad = _round_up(B, block_b)

    t_pad = t.astype(jnp.int32)
    if B_pad != B:
        # Padded rows select table row 0; their outputs are sliced off below.
        t_pad = jnp.pad(t_pad, (0, B_pad - B))
    t_pad = t_pad.reshape(B_pad, 1)

    grid = (B_pad // block_b,)

    # --- explicit VMEM sizing (matters on v7x: 64 MiB physical, 32 MiB default) ---
    f32b = 4
    const_bytes = (T_pad * d_model_pad + d_model_pad * dim_pad + dim_pad
                   + dim_pad * dim_pad + dim_pad) * f32b
    step_bytes = block_b * 4 + block_b * dim_pad * f32b
    vmem_needed = 2 * (const_bytes + step_bytes) + (2 << 20)   # double-buffer + headroom
    vmem_limit = vmem_needed if vmem_needed > (32 << 20) else None

    out = pl.pallas_call(
        _time_embedding_kernel,
        out_shape=jax.ShapeDtypeStruct((B_pad, dim_pad), jnp.float32),
        grid=grid,
        in_specs=[
            pl.BlockSpec((block_b, 1), lambda i: (i, 0)),               # t indices
            pl.BlockSpec((T_pad, d_model_pad), lambda i: (0, 0)),       # table
            pl.BlockSpec((d_model_pad, dim_pad), lambda i: (0, 0)),     # W1
            pl.BlockSpec((1, dim_pad), lambda i: (0, 0)),               # b1
            pl.BlockSpec((dim_pad, dim_pad), lambda i: (0, 0)),         # W2
            pl.BlockSpec((1, dim_pad), lambda i: (0, 0)),               # b2
        ],
        out_specs=pl.BlockSpec((block_b, dim_pad), lambda i: (i, 0)),
        compiler_params=pltpu.CompilerParams(
            dimension_semantics=("parallel",),
            vmem_limit_bytes=vmem_limit,
        ),
    )(t_pad, emb_table, w1, b1, w2, b2)

    if B_pad != B or dim_pad != dim:
        out = out[:B, :dim]
    return out


# ----------------------------------------------------------------------------
# Pure-JAX reference (mirrors the PyTorch forward).
# ----------------------------------------------------------------------------
def _reference_forward(t, emb_table, w1, b1, w2, b2):
    x = jnp.take(emb_table, t, axis=0)
    h = x @ w1 + jnp.reshape(b1, (1, -1))
    h = h * jax.nn.sigmoid(h)
    return h @ w2 + jnp.reshape(b2, (1, -1))


if __name__ == "__main__":
    # Small shapes consistent with the module: T timesteps, d_model, dim.
    T, d_model, dim = 16, 32, 64
    batch = 10  # deliberately NOT a multiple of 8: exercises the padding path

    key = jax.random.PRNGKey(0)
    k1, k2, kt = jax.random.split(key, 3)

    emb_table = _make_sinusoidal_table(T, d_model)            # [T, d_model]
    w1 = _xavier_uniform(k1, d_model, dim)                    # [d_model, dim]
    b1 = jnp.zeros((1, dim), dtype=jnp.float32)               # zeros (init.zeros_)
    w2 = _xavier_uniform(k2, dim, dim)                        # [dim, dim]
    b2 = jnp.zeros((1, dim), dtype=jnp.float32)

    t = jax.random.randint(kt, (batch,), 0, T, dtype=jnp.int32)

    out = time_embedding_forward(t, emb_table, w1, b1, w2, b2)
    out = jax.block_until_ready(out)

    ref = _reference_forward(t, emb_table, w1, b1, w2, b2)
    assert out.shape == (batch, dim)
    assert jnp.allclose(out, ref, atol=1e-5, rtol=1e-5), "mismatch vs reference"

    print("KERNEL_OK")
</pallas_src>

<mosaic_0001>
module attributes {stable_mosaic.version = 11 : i64} {
  func.func @_time_embedding_kernel(%arg0: i32, %arg1: memref<16x1xi32, #tpu.memory_space<vmem>>, %arg2: memref<16x128xf32, #tpu.memory_space<vmem>>, %arg3: memref<128x128xf32, #tpu.memory_space<vmem>>, %arg4: memref<1x128xf32, #tpu.memory_space<vmem>>, %arg5: memref<128x128xf32, #tpu.memory_space<vmem>>, %arg6: memref<1x128xf32, #tpu.memory_space<vmem>>, %arg7: memref<16x128xf32, #tpu.memory_space<vmem>>) attributes {dimension_semantics = [#tpu.dimension_semantics<parallel>], iteration_bounds = array<i64: 1>, scalar_prefetch = 0 : i64, scratch_operands = 0 : i64, tpu.core_type = #tpu.core_type<tc>, window_params = [{transform_indices = @transform_0, window_bounds = array<i64: 16, 1>}, {pipeline_mode = #tpu.pipeline_mode<synchronous>, transform_indices = @transform_1, window_bounds = array<i64: 16, 128>}, {pipeline_mode = #tpu.pipeline_mode<synchronous>, transform_indices = @transform_2, window_bounds = array<i64: 128, 128>}, {pipeline_mode = #tpu.pipeline_mode<synchronous>, transform_indices = @transform_3, window_bounds = array<i64: 1, 128>}, {pipeline_mode = #tpu.pipeline_mode<synchronous>, transform_indices = @transform_4, window_bounds = array<i64: 128, 128>}, {pipeline_mode = #tpu.pipeline_mode<synchronous>, transform_indices = @transform_5, window_bounds = array<i64: 1, 128>}, {transform_indices = @transform_6, window_bounds = array<i64: 16, 128>}]} {
    %c0 = arith.constant 0 : index
    %c0_0 = arith.constant 0 : index
    %0 = vector.load %arg1[%c0, %c0_0] : memref<16x1xi32, #tpu.memory_space<vmem>>, vector<16x1xi32>
    %1 = tpu.iota {dimensions = array<i32: 1>} : vector<16x16xi32>
    %2 = vector.broadcast %0 : vector<16x1xi32> to vector<16x16xi32>
    %3 = arith.cmpi eq, %1, %2 : vector<16x16xi32>
    %4 = arith.extui %3 : vector<16x16xi1> to vector<16x16xi32>
    %5 = arith.sitofp %4 : vector<16x16xi32> to vector<16x16xf32>
    %c0_1 = arith.constant 0 : index
    %c0_2 = arith.constant 0 : index
    %6 = vector.load %arg2[%c0_1, %c0_2] : memref<16x128xf32, #tpu.memory_space<vmem>>, vector<16x128xf32>
    %cst = arith.constant dense<0.000000e+00> : vector<16x128xf32>
    %7 = tpu.matmul %5, %6, %cst {dimension_numbers = #tpu.dot_dimension_numbers<[1], [0], [0], [1], [0, 0, 1, 1], [], []>} : vector<16x16xf32>, vector<16x128xf32>, vector<16x128xf32> -> vector<16x128xf32>
    %c0_3 = arith.constant 0 : index
    %c0_4 = arith.constant 0 : index
    %8 = vector.load %arg3[%c0_3, %c0_4] : memref<128x128xf32, #tpu.memory_space<vmem>>, vector<128x128xf32>
    %cst_5 = arith.constant dense<0.000000e+00> : vector<16x128xf32>
    %9 = tpu.matmul %7, %8, %cst_5 {dimension_numbers = #tpu.dot_dimension_numbers<[1], [0], [0], [1], [0, 0, 1, 1], [], []>} : vector<16x128xf32>, vector<128x128xf32>, vector<16x128xf32> -> vector<16x128xf32>
    %c0_6 = arith.constant 0 : index
    %c0_7 = arith.constant 0 : index
    %10 = vector.load %arg4[%c0_6, %c0_7] : memref<1x128xf32, #tpu.memory_space<vmem>>, vector<1x128xf32>
    %11 = vector.broadcast %10 : vector<1x128xf32> to vector<16x128xf32>
    %12 = arith.addf %9, %11 : vector<16x128xf32>
    %13 = arith.negf %12 : vector<16x128xf32>
    %14 = math.exp %13 : vector<16x128xf32>
    %cst_8 = arith.constant 1.000000e+00 : f32
    %15 = vector.broadcast %cst_8 : f32 to vector<16x128xf32>
    %16 = arith.addf %15, %14 : vector<16x128xf32>
    %17 = arith.divf %15, %16 : vector<16x128xf32>
    %18 = arith.mulf %12, %17 : vector<16x128xf32>
    %c0_9 = arith.constant 0 : index
    %c0_10 = arith.constant 0 : index
    %19 = vector.load %arg5[%c0_9, %c0_10] : memref<128x128xf32, #tpu.memory_space<vmem>>, vector<128x128xf32>
    %cst_11 = arith.constant dense<0.000000e+00> : vector<16x128xf32>
    %20 = tpu.matmul %18, %19, %cst_11 {dimension_numbers = #tpu.dot_dimension_numbers<[1], [0], [0], [1], [0, 0, 1, 1], [], []>} : vector<16x128xf32>, vector<128x128xf32>, vector<16x128xf32> -> vector<16x128xf32>
    %c0_12 = arith.constant 0 : index
    %c0_13 = arith.constant 0 : index
    %21 = vector.load %arg6[%c0_12, %c0_13] : memref<1x128xf32, #tpu.memory_space<vmem>>, vector<1x128xf32>
    %22 = vector.broadcast %21 : vector<1x128xf32> to vector<16x128xf32>
    %23 = arith.addf %20, %22 : vector<16x128xf32>
    %c0_14 = arith.constant 0 : index
    %c0_15 = arith.constant 0 : index
    %24 = vector.load %arg7[%c0_14, %c0_15] : memref<16x128xf32, #tpu.memory_space<vmem>>, vector<16x128xf32>
    tpu.vector_store %arg7[%c0_14, %c0_15], %23 {strides = array<i32>} : memref<16x128xf32, #tpu.memory_space<vmem>>, vector<16x128xf32>,
    return
  }
  func.func @transform_0(%arg0: i32) -> (i32, i32) {
    %c0_i32 = arith.constant 0 : i32
    %c0_i32_0 = arith.constant 0 : i32
    return %arg0, %c0_i32 : i32, i32
  }
  func.func @transform_1(%arg0: i32) -> (i32, i32) {
    %c0_i32 = arith.constant 0 : i32
    %c0_i32_0 = arith.constant 0 : i32
    %c0_i32_1 = arith.constant 0 : i32
    return %c0_i32, %c0_i32_0 : i32, i32
  }
  func.func @transform_2(%arg0: i32) -> (i32, i32) {
    %c0_i32 = arith.constant 0 : i32
    %c0_i32_0 = arith.constant 0 : i32
    %c0_i32_1 = arith.constant 0 : i32
    return %c0_i32, %c0_i32_0 : i32, i32
  }
  func.func @transform_3(%arg0: i32) -> (i32, i32) {
    %c0_i32 = arith.constant 0 : i32
    %c0_i32_0 = arith.constant 0 : i32
    %c0_i32_1 = arith.constant 0 : i32
    return %c0_i32, %c0_i32_0 : i32, i32
  }
  func.func @transform_4(%arg0: i32) -> (i32, i32) {
    %c0_i32 = arith.constant 0 : i32
    %c0_i32_0 = arith.constant 0 : i32
    %c0_i32_1 = arith.constant 0 : i32
    return %c0_i32, %c0_i32_0 : i32, i32
  }
  func.func @transform_5(%arg0: i32) -> (i32, i32) {
    %c0_i32 = arith.constant 0 : i32
    %c0_i32_0 = arith.constant 0 : i32
    %c0_i32_1 = arith.constant 0 : i32
    return %c0_i32, %c0_i32_0 : i32, i32
  }
  func.func @transform_6(%arg0: i32) -> (i32, i32) {
    %c0_i32 = arith.constant 0 : i32
    %c0_i32_0 = arith.constant 0 : i32
    return %arg0, %c0_i32 : i32, i32
  }
}

</mosaic_0001>

<llo_original>
// kernel: tpu_custom_call.1
$region0: #{tpu_custom_call.1}
  #allocation0 [shape = 'u32[]', space=smem, size = 0x4, offset = 0x4, fixed_abs, tag = 'smem constant byte address 0x4 - core index']
  #allocation1 [shape = 'u32[144,128]{1,0:T(1,128)}', space=vmem, size = 0x12000, scoped, tag = 'internal scratch']
  %s0 = inlined_call_operand.vmem [shape: s32[16,1], index: 0, kind: input, shape index: {}]
  %s1 = inlined_call_operand.vmem [shape: f32[16,128], index: 1, kind: input, shape index: {}]
  %s2 = inlined_call_operand.hbm [shape: f32[128,128], index: 2, kind: input, shape index: {}]
  %s3 = inlined_call_operand.vmem [shape: f32[1,128], index: 3, kind: input, shape index: {}]
  %s4 = inlined_call_operand.hbm [shape: f32[128,128], index: 4, kind: input, shape index: {}]
  %s5 = inlined_call_operand.vmem [shape: f32[1,128], index: 5, kind: input, shape index: {}]
  %s6 = inlined_call_operand.hbm [shape: f32[16,128], index: 6, kind: output, shape index: {}]
  %s7 = sld [smem:[#allocation0]]
  $region42: #{tpu_custom_call.1} parent=0
    _
  %s9 = ssub.s32 1, %s7
  %s10 = scalar_select 0, %s9, %s7
  $region1: #{tpu_custom_call.1} parent=0
    #allocation2 [shape = 'u8[65536]{0}', space=vmem, size = 0x10000, scoped, tag = 'input window, operand 2, single buffered']
    #allocation3 [shape = 's32[1]{0}', space=sflag, size = 0x4, scoped, tag = 'scoped memory for tpu_custom_call.1']
    #allocation4 [shape = 's32[1]{0}', space=sflag, size = 0x4, scoped, tag = 'scoped memory for tpu_custom_call.1']
    #allocation5 [shape = 'u8[65536]{0}', space=vmem, size = 0x10000, scoped, tag = 'input window, operand 4, single buffered']
    #allocation6 [shape = 's32[1]{0}', space=sflag, size = 0x4, scoped, tag = 'scoped memory for tpu_custom_call.1']
    #allocation7 [shape = 'u8[8192]{0}', space=vmem, size = 0x2000, scoped, tag = 'output window, operand 0, single buffered']
    %11 = vsyncpa [#allocation3], 0
    %12 = vsyncpa [#allocation6], 0
    %13 = vsyncpa [#allocation4], 0
    // Predicated region
    $region2: #{tpu_custom_call.1} parent=1 // pred_check
      _
    $region3: #{tpu_custom_call.1} parent=1 // pred_check_branch
      %15 = sbr.rel (0) target = $region5
    $region4: #{tpu_custom_call.1} parent=1 // pred_region
      _
    $region5: #{tpu_custom_call.1} parent=1 // pred_fallthru
      _
    // Predicated region
    $region6: #{tpu_custom_call.1} parent=1 // pred_check
      _
    $region7: #{tpu_custom_call.1} parent=1 // pred_check_branch
      %17 = sbr.rel (0) target = $region9
    $region8: #{tpu_custom_call.1} parent=1 // pred_region
      _
    $region9: #{tpu_custom_call.1} parent=1 // pred_fallthru
      _
    // Predicated region
    $region10: #{tpu_custom_call.1} parent=1 // pred_check
      _
    $region11: #{tpu_custom_call.1} parent=1 // pred_check_branch
      %19 = sbr.rel (0) target = $region13
    $region12: #{tpu_custom_call.1} parent=1 // pred_region
      %s21 = ssub.s32 2048, 2048
      %22 = vsyncadd [#allocation3], %s21
      %s23 = sshll.u32 [#allocation2], 4
      %s24 = int_to_ptr.vmem [resolvable:$true] %s23
      %29 = dma.hbm_to_vmem [thread:$0]  %s2, 2048, %s24, [#allocation3], 128, 128, 8
    $region13: #{tpu_custom_call.1} parent=1 // pred_fallthru
      _
    // Predicated region
    $region14: #{tpu_custom_call.1} parent=1 // pred_check
      _
    $region15: #{tpu_custom_call.1} parent=1 // pred_check_branch
      %31 = sbr.rel (0) target = $region17
    $region16: #{tpu_custom_call.1} parent=1 // pred_region
      _
    $region17: #{tpu_custom_call.1} parent=1 // pred_fallthru
      _
    // Predicated region
    $region18: #{tpu_custom_call.1} parent=1 // pred_check
      _
    $region19: #{tpu_custom_call.1} parent=1 // pred_check_branch
      %33 = sbr.rel (0) target = $region21
    $region20: #{tpu_custom_call.1} parent=1 // pred_region
      %s35 = ssub.s32 2048, 2048
      %36 = vsyncadd [#allocation6], %s35
      %s37 = sshll.u32 [#allocation5], 4
      %s38 = int_to_ptr.vmem [resolvable:$true] %s37
      %43 = dma.hbm_to_vmem [thread:$0]  %s4, 2048, %s38, [#allocation6], 128, 128, 8
    $region21: #{tpu_custom_call.1} parent=1 // pred_fallthru
      _
    // Predicated region
    $region22: #{tpu_custom_call.1} parent=1 // pred_check
      _
    $region23: #{tpu_custom_call.1} parent=1 // pred_check_branch
      %45 = sbr.rel (0) target = $region25
    $region24: #{tpu_custom_call.1} parent=1 // pred_region
      _
    $region25: #{tpu_custom_call.1} parent=1 // pred_fallthru
      _
    // Predicated region
    $region26: #{tpu_custom_call.1} parent=1 // pred_check
      _
    $region27: #{tpu_custom_call.1} parent=1 // pred_check_branch
      %47 = sbr.rel (0) target = $region29
    $region28: #{tpu_custom_call.1} parent=1 // pred_region
      %48 = dma.done [#allocation3], 2048
    $region29: #{tpu_custom_call.1} parent=1 // pred_fallthru
      _
    // Predicated region
    $region30: #{tpu_custom_call.1} parent=1 // pred_check
      _
    $region31: #{tpu_custom_call.1} parent=1 // pred_check_branch
      %50 = sbr.rel (0) target = $region33
    $region32: #{tpu_custom_call.1} parent=1 // pred_region
      %51 = dma.done [#allocation6], 2048
    $region33: #{tpu_custom_call.1} parent=1 // pred_fallthru
      _
    %v52 = vld [vmem:[%s0] sm:$0xff]
    %v53 = vld [vmem:[%s0 + $0x8] sm:$0xff]
    %v54 = vlaneseq
    %v55 = vand.u32 %v54, 127
    %56 = vset.pattern.permute.xlu0 0
    %57 = vperm.xlu0 %56, %v52
    %v58 = vpop.permute.xlu0 %57
    %59 = vset.pattern.permute.xlu0 0
    %60 = vperm.xlu0 %59, %v53
    %v61 = vpop.permute.xlu0 %60
    %vm62 = vcmp.eq.s32.totalorder %v55, %v58
    %vm63 = vcmp.eq.s32.totalorder %v55, %v61
    %v64 = vsel %vm62, 1, 0
    %v65 = vsel %vm63, 1, 0
    %v66 = vcvt.s32.f32 %v64
    %v67 = vcvt.s32.f32 %v65
    %v68 = vld [vmem:[%s1] sm:$0xff]
    %v69 = vld [vmem:[%s1 + $0x8] sm:$0xff]
    %vm70 = vcmask 130048
    %v72 = vsel %vm70, %v66, 0
    %v75 = vsel %vm70, %v67, 0
    %77 = vmatprep.subr.mxu0 0.0
    %78 = vmatpush1.msra.mxu0 0.0
    %79 = vmatprep.subr.mxu0 0.0
    %80 = vmatpush1.msra.mxu0 0.0
    %81 = vmatprep.subr.mxu0 0.0
    %82 = vmatpush1.msra.mxu0 0.0
    %83 = vmatprep.subr.mxu0 0.0
    %84 = vmatpush1.msra.mxu0 0.0
    %85 = vmatprep.subr.mxu0 0.0
    %86 = vmatpush1.msra.mxu0 0.0
    %87 = vmatprep.subr.mxu0 0.0
    %88 = vmatpush1.msra.mxu0 0.0
    %89 = vmatprep.subr.mxu0 0.0
    %90 = vmatpush1.msra.mxu0 0.0
    %91 = vmatprep.subr.mxu0 0.0
    %92 = vmatpush1.msra.mxu0 0.0
    %93 = vmatprep.subr.mxu0 0.0
    %94 = vmatpush1.msra.mxu0 0.0
    %95 = vmatprep.subr.mxu0 0.0
    %96 = vmatpush1.msra.mxu0 0.0
    %97 = vmatprep.subr.mxu0 0.0
    %98 = vmatpush1.msra.mxu0 0.0
    %99 = vmatprep.subr.mxu0 0.0
    %100 = vmatpush1.msra.mxu0 0.0
    %101 = vmatprep.subr.mxu0 0.0
    %102 = vmatpush1.msra.mxu0 0.0
    %103 = vmatprep.subr.mxu0 0.0
    %104 = vmatpush1.msra.mxu0 0.0
    %105 = vmatprep.subr.mxu0 0.0
    %106 = vmatpush1.msra.mxu0 %v69
    %107 = vmatprep.subr.mxu0 0.0
    %108 = vmatpush1.msra.mxu0 %v68
    %109 = vmatprep.subr.mxu0 0.0
    %110 = vmatpush2.msra.mxu0 0.0
    %111 = vmatprep.subr.mxu0 0.0
    %112 = vmatpush2.msra.mxu0 0.0
    %113 = vmatprep.subr.mxu0 0.0
    %114 = vmatpush2.msra.mxu0 0.0
    %115 = vmatprep.subr.mxu0 0.0
    %116 = vmatpush2.msra.mxu0 0.0
    %117 = vmatprep.subr.mxu0 0.0
    %118 = vmatpush2.msra.mxu0 0.0
    %119 = vmatprep.subr.mxu0 0.0
    %120 = vmatpush2.msra.mxu0 0.0
    %121 = vmatprep.subr.mxu0 0.0
    %122 = vmatpush2.msra.mxu0 0.0
    %123 = vmatprep.subr.mxu0 0.0
    %124 = vmatpush2.msra.mxu0 0.0
    %125 = vmatprep.subr.mxu0 0.0
    %126 = vmatpush2.msra.mxu0 0.0
    %127 = vmatprep.subr.mxu0 0.0
    %128 = vmatpush2.msra.mxu0 0.0
    %129 = vmatprep.subr.mxu0 0.0
    %130 = vmatpush2.msra.mxu0 0.0
    %131 = vmatprep.subr.mxu0 0.0
    %132 = vmatpush2.msra.mxu0 0.0
    %133 = vmatprep.subr.mxu0 0.0
    %134 = vmatpush2.msra.mxu0 0.0
    %135 = vmatprep.subr.mxu0 0.0
    %136 = vmatpush2.msra.mxu0 0.0
    %137 = vmatprep.subr.mxu0 0.0
    %138 = vmatpush2.msra.mxu0 0.0
    %139 = vmatprep.subr.mxu0 0.0
    %140 = vmatpush2.msra.mxu0 0.0
    %141 = vmatprep.mubr.f32.mxu0 0.0
    %142 = vmatmul.mubr.f32.gmra.mxu0 %v72
    %v143 = vpop.f32.mrf.mxu0
    %v144 = vadd.f32 0.0, %v143
    %v145 = vpop.f32.mrf.mxu0
    %146 = vmatprep.mubr.f32.mxu0 0.0
    %147 = vmatmul.mubr.f32.gmra.mxu0 %v75
    %v148 = vpop.f32.mrf.mxu0
    %v149 = vadd.f32 0.0, %v148
    %v150 = vpop.f32.mrf.mxu0
    %151 = vdwg.mxu0
    %v152 = vld [vmem:[#allocation2] sm:$0xff]
    %v153 = vld [vmem:[#allocation2 + $0x8] sm:$0xff]
    %v154 = vld [vmem:[#allocation2 + $0x10] sm:$0xff]
    %v155 = vld [vmem:[#allocation2 + $0x18] sm:$0xff]
    %v156 = vld [vmem:[#allocation2 + $0x20] sm:$0xff]
    %v157 = vld [vmem:[#allocation2 + $0x28] sm:$0xff]
    %v158 = vld [vmem:[#allocation2 + $0x30] sm:$0xff]
    %v159 = vld [vmem:[#allocation2 + $0x38] sm:$0xff]
    %v160 = vld [vmem:[#allocation2 + $0x40] sm:$0xff]
    %v161 = vld [vmem:[#allocation2 + $0x48] sm:$0xff]
    %v162 = vld [vmem:[#allocation2 + $0x50] sm:$0xff]
    %v163 = vld [vmem:[#allocation2 + $0x58] sm:$0xff]
    %v164 = vld [vmem:[#allocation2 + $0x60] sm:$0xff]
    %v165 = vld [vmem:[#allocation2 + $0x68] sm:$0xff]
    %v166 = vld [vmem:[#allocation2 + $0x70] sm:$0xff]
    %v167 = vld [vmem:[#allocation2 + $0x78] sm:$0xff]
    %v168 = vld [vmem:[%s3] sm:$0x1]
    %v170 = vlaneseq
    %v171 = vshrl.u32 %v170, 7
    %v172 = vsub.s32 0, %v171
    %v173 = vrot.slane %v168, %v172
    %175 = vmatprep.subr.mxu0 0.0
    %176 = vmatpush1.msra.mxu0 %v167
    %177 = vmatprep.subr.mxu0 0.0
    %178 = vmatpush1.msra.mxu0 %v166
    %179 = vmatprep.subr.mxu0 0.0
    %180 = vmatpush1.msra.mxu0 %v165
    %181 = vmatprep.subr.mxu0 0.0
    %182 = vmatpush1.msra.mxu0 %v164
    %183 = vmatprep.subr.mxu0 0.0
    %184 = vmatpush1.msra.mxu0 %v163
    %185 = vmatprep.subr.mxu0 0.0
    %186 = vmatpush1.msra.mxu0 %v162
    %187 = vmatprep.subr.mxu0 0.0
    %188 = vmatpush1.msra.mxu0 %v161
    %189 = vmatprep.subr.mxu0 0.0
    %190 = vmatpush1.msra.mxu0 %v160
    %191 = vmatprep.subr.mxu0 0.0
    %192 = vmatpush1.msra.mxu0 %v159
    %193 = vmatprep.subr.mxu0 0.0
    %194 = vmatpush1.msra.mxu0 %v158
    %195 = vmatprep.subr.mxu0 0.0
    %196 = vmatpush1.msra.mxu0 %v157
    %197 = vmatprep.subr.mxu0 0.0
    %198 = vmatpush1.msra.mxu0 %v156
    %199 = vmatprep.subr.mxu0 0.0
    %200 = vmatpush1.msra.mxu0 %v155
    %201 = vmatprep.subr.mxu0 0.0
    %202 = vmatpush1.msra.mxu0 %v154
    %203 = vmatprep.subr.mxu0 0.0
    %204 = vmatpush1.msra.mxu0 %v153
    %205 = vmatprep.subr.mxu0 0.0
    %206 = vmatpush1.msra.mxu0 %v152
    %207 = vmatprep.subr.mxu0 0.0
    %208 = vmatpush2.msra.mxu0 0.0
    %209 = vmatprep.subr.mxu0 0.0
    %210 = vmatpush2.msra.mxu0 0.0
    %211 = vmatprep.subr.mxu0 0.0
    %212 = vmatpush2.msra.mxu0 0.0
    %213 = vmatprep.subr.mxu0 0.0
    %214 = vmatpush2.msra.mxu0 0.0
    %215 = vmatprep.subr.mxu0 0.0
    %216 = vmatpush2.msra.mxu0 0.0
    %217 = vmatprep.subr.mxu0 0.0
    %218 = vmatpush2.msra.mxu0 0.0
    %219 = vmatprep.subr.mxu0 0.0
    %220 = vmatpush2.msra.mxu0 0.0
    %221 = vmatprep.subr.mxu0 0.0
    %222 = vmatpush2.msra.mxu0 0.0
    %223 = vmatprep.subr.mxu0 0.0
    %224 = vmatpush2.msra.mxu0 0.0
    %225 = vmatprep.subr.mxu0 0.0
    %226 = vmatpush2.msra.mxu0 0.0
    %227 = vmatprep.subr.mxu0 0.0
    %228 = vmatpush2.msra.mxu0 0.0
    %229 = vmatprep.subr.mxu0 0.0
    %230 = vmatpush2.msra.mxu0 0.0
    %231 = vmatprep.subr.mxu0 0.0
    %232 = vmatpush2.msra.mxu0 0.0
    %233 = vmatprep.subr.mxu0 0.0
    %234 = vmatpush2.msra.mxu0 0.0
    %235 = vmatprep.subr.mxu0 0.0
    %236 = vmatpush2.msra.mxu0 0.0
    %237 = vmatprep.subr.mxu0 0.0
    %238 = vmatpush2.msra.mxu0 0.0
    %239 = vmatprep.mubr.f32.mxu0 0.0
    %240 = vmatmul.mubr.f32.gmra.mxu0 %v144
    %v241 = vpop.f32.mrf.mxu0
    %v242 = vadd.f32 %v173, %v241
    %v243 = vpop.f32.mrf.mxu0
    %244 = vmatprep.mubr.f32.mxu0 0.0
    %245 = vmatmul.mubr.f32.gmra.mxu0 %v149
    %v246 = vpop.f32.mrf.mxu0
    %v247 = vadd.f32 %v173, %v246
    %v248 = vpop.f32.mrf.mxu0
    %249 = vdwg.mxu0
    %v250 = vxor.u32 %v242, 2147483648
    %v251 = vxor.u32 %v247, 2147483648
    %v252 = vmul.f32 %v250, 1.442695
    %v253 = vpow.pop %v252
    %v254 = vmul.f32 %v251, 1.442695
    %v255 = vpow.pop %v254
    %v256 = vadd.f32 %v253, 1.0
    %v257 = vadd.f32 %v255, 1.0
    %v258 = vrcp.pop %v256
    %v259 = vmul.f32 1.0, %v258
    %v260 = vrcp.pop %v257
    %v261 = vmul.f32 1.0, %v260
    %v262 = vmul.f32 %v242, %v259
    %v263 = vmul.f32 %v247, %v261
    %v264 = vld [vmem:[#allocation5] sm:$0xff]
    %v265 = vld [vmem:[#allocation5 + $0x8] sm:$0xff]
    %v266 = vld [vmem:[#allocation5 + $0x10] sm:$0xff]
    %v267 = vld [vmem:[#allocation5 + $0x18] sm:$0xff]
    %v268 = vld [vmem:[#allocation5 + $0x20] sm:$0xff]
    %v269 = vld [vmem:[#allocation5 + $0x28] sm:$0xff]
    %v270 = vld [vmem:[#allocation5 + $0x30] sm:$0xff]
    %v271 = vld [vmem:[#allocation5 + $0x38] sm:$0xff]
    %v272 = vld [vmem:[#allocation5 + $0x40] sm:$0xff]
    %v273 = vld [vmem:[#allocation5 + $0x48] sm:$0xff]
    %v274 = vld [vmem:[#allocation5 + $0x50] sm:$0xff]
    %v275 = vld [vmem:[#allocation5 + $0x58] sm:$0xff]
    %v276 = vld [vmem:[#allocation5 + $0x60] sm:$0xff]
    %v277 = vld [vmem:[#allocation5 + $0x68] sm:$0xff]
    %v278 = vld [vmem:[#allocation5 + $0x70] sm:$0xff]
    %v279 = vld [vmem:[#allocation5 + $0x78] sm:$0xff]
    %v280 = vld [vmem:[%s5] sm:$0x1]
    %v282 = vlaneseq
    %v283 = vshrl.u32 %v282, 7
    %v284 = vsub.s32 0, %v283
    %v285 = vrot.slane %v280, %v284
    %287 = vmatprep.subr.mxu0 0.0
    %288 = vmatpush1.msra.mxu0 %v279
    %289 = vmatprep.subr.mxu0 0.0
    %290 = vmatpush1.msra.mxu0 %v278
    %291 = vmatprep.subr.mxu0 0.0
    %292 = vmatpush1.msra.mxu0 %v277
    %293 = vmatprep.subr.mxu0 0.0
    %294 = vmatpush1.msra.mxu0 %v276
    %295 = vmatprep.subr.mxu0 0.0
    %296 = vmatpush1.msra.mxu0 %v275
    %297 = vmatprep.subr.mxu0 0.0
    %298 = vmatpush1.msra.mxu0 %v274
    %299 = vmatprep.subr.mxu0 0.0
    %300 = vmatpush1.msra.mxu0 %v273
    %301 = vmatprep.subr.mxu0 0.0
    %302 = vmatpush1.msra.mxu0 %v272
    %303 = vmatprep.subr.mxu0 0.0
    %304 = vmatpush1.msra.mxu0 %v271
    %305 = vmatprep.subr.mxu0 0.0
    %306 = vmatpush1.msra.mxu0 %v270
    %307 = vmatprep.subr.mxu0 0.0
    %308 = vmatpush1.msra.mxu0 %v269
    %309 = vmatprep.subr.mxu0 0.0
    %310 = vmatpush1.msra.mxu0 %v268
    %311 = vmatprep.subr.mxu0 0.0
    %312 = vmatpush1.msra.mxu0 %v267
    %313 = vmatprep.subr.mxu0 0.0
    %314 = vmatpush1.msra.mxu0 %v266
    %315 = vmatprep.subr.mxu0 0.0
    %316 = vmatpush1.msra.mxu0 %v265
    %317 = vmatprep.subr.mxu0 0.0
    %318 = vmatpush1.msra.mxu0 %v264
    %319 = vmatprep.subr.mxu0 0.0
    %320 = vmatpush2.msra.mxu0 0.0
    %321 = vmatprep.subr.mxu0 0.0
    %322 = vmatpush2.msra.mxu0 0.0
    %323 = vmatprep.subr.mxu0 0.0
    %324 = vmatpush2.msra.mxu0 0.0
    %325 = vmatprep.subr.mxu0 0.0
    %326 = vmatpush2.msra.mxu0 0.0
    %327 = vmatprep.subr.mxu0 0.0
    %328 = vmatpush2.msra.mxu0 0.0
    %329 = vmatprep.subr.mxu0 0.0
    %330 = vmatpush2.msra.mxu0 0.0
    %331 = vmatprep.subr.mxu0 0.0
    %332 = vmatpush2.msra.mxu0 0.0
    %333 = vmatprep.subr.mxu0 0.0
    %334 = vmatpush2.msra.mxu0 0.0
    %335 = vmatprep.subr.mxu0 0.0
    %336 = vmatpush2.msra.mxu0 0.0
    %337 = vmatprep.subr.mxu0 0.0
    %338 = vmatpush2.msra.mxu0 0.0
    %339 = vmatprep.subr.mxu0 0.0
    %340 = vmatpush2.msra.mxu0 0.0
    %341 = vmatprep.subr.mxu0 0.0
    %342 = vmatpush2.msra.mxu0 0.0
    %343 = vmatprep.subr.mxu0 0.0
    %344 = vmatpush2.msra.mxu0 0.0
    %345 = vmatprep.subr.mxu0 0.0
    %346 = vmatpush2.msra.mxu0 0.0
    %347 = vmatprep.subr.mxu0 0.0
    %348 = vmatpush2.msra.mxu0 0.0
    %349 = vmatprep.subr.mxu0 0.0
    %350 = vmatpush2.msra.mxu0 0.0
    %351 = vmatprep.mubr.f32.mxu0 0.0
    %352 = vmatmul.mubr.f32.gmra.mxu0 %v262
    %v353 = vpop.f32.mrf.mxu0
    %v354 = vadd.f32 %v285, %v353
    %v355 = vpop.f32.mrf.mxu0
    %356 = vmatprep.mubr.f32.mxu0 0.0
    %357 = vmatmul.mubr.f32.gmra.mxu0 %v263
    %v358 = vpop.f32.mrf.mxu0
    %v359 = vadd.f32 %v285, %v358
    %v360 = vpop.f32.mrf.mxu0
    %361 = vdwg.mxu0
    %362 = vst [vmem:[#allocation7] sm:$0xff] %v354
    %363 = vst [vmem:[#allocation7 + $0x8] sm:$0xff] %v359
    // Predicated region
    $region34: #{tpu_custom_call.1} parent=1 // pred_check
      _
    $region35: #{tpu_custom_call.1} parent=1 // pred_check_branch
      %365 = sbr.rel (0) target = $region37
    $region36: #{tpu_custom_call.1} parent=1 // pred_region
      %s367 = ssub.s32 256, 256
      %368 = vsyncadd [#allocation4], %s367
      %s369 = sshll.u32 [#allocation7], 4
      %s370 = int_to_ptr.vmem [resolvable:$true] %s369
      %375 = dma.vmem_to_hbm [thread:$0]  %s370, 256, %s6, [#allocation4], 128, 128, 8
    $region37: #{tpu_custom_call.1} parent=1 // pred_fallthru
      _
    // Predicated region
    $region38: #{tpu_custom_call.1} parent=1 // pred_check
      _
    $region39: #{tpu_custom_call.1} parent=1 // pred_check_branch
      %377 = sbr.rel (0) target = $region41
    $region40: #{tpu_custom_call.1} parent=1 // pred_region
      %378 = dma.done [#allocation4], 256
    $region41: #{tpu_custom_call.1} parent=1 // pred_fallthru
      _
    %379 = vsyncpa [#allocation3], 1
    %380 = vsyncpa [#allocation6], 1
    %381 = vsyncpa [#allocation4], 1

</llo_original>
